<compile_context>
chip_gen: v6e
topology: v6e:2x2x1
jax: 0.10.0
libtpu: 0.0.40
codegen_flags: <defaults>
</compile_context>

<pallas_src>
import jax
import jax.numpy as jnp
from jax.experimental import pallas as pl
from jax.experimental.pallas import tpu as pltpu

BN_EPS = 1e-5


def _round_up(n: int, m: int) -> int:
    return ((n + m - 1) // m) * m


def _make_fnn_kernel(num_hidden_layers: int, return_embed: bool):
    """Fused kernel: x -> (Linear(bf16 MXU) / BN / ReLU) * L [-> Linear(+bias)]."""

    def kernel(mask_ref, x_ref, *refs):
        # refs layout:
        #   return_embed=False: [w0,g0,b0, ..., w_{L-1},g,b, w_lin, b_lin, out]
        #   return_embed=True : [w0,g0,b0, ..., w_{L-1},g,b, out]
        out_ref = refs[-1]
        p = refs[:-1]

        # mask: [8, B_pad] f32; row 0 holds 1/batch on real rows, 0 elsewhere,
        # rows 1..7 are zero (kept 8-deep for a tile-aligned MXU reduction).
        mask = mask_ref[...]
        h_mm = x_ref[...]                            # [B_pad, D_in_pad] bf16

        idx = 0
        for _ in range(num_hidden_layers):
            w = p[idx][...]                          # [d_in_pad, d_h_pad] bf16
            gamma = p[idx + 1][...]                  # [1, d_h_pad] f32
            beta = p[idx + 2][...]                   # [1, d_h_pad] f32
            idx += 3

            # Linear (no bias): bf16 operands on the MXU, f32 accumulation.
            h = jnp.dot(h_mm, w, preferred_element_type=jnp.float32)

            # Batch statistics as MXU row-reductions (single pass over h,
            # XLU stays free). mask already carries the 1/B factor, and its
            # zeros on padded batch rows keep them out of the statistics.
            mean = jnp.dot(mask, h,
                           preferred_element_type=jnp.float32)[0:1, :]
            ex2 = jnp.dot(mask, h * h,
                          preferred_element_type=jnp.float32)[0:1, :]
            var = jnp.maximum(ex2 - mean * mean, 0.0)

            # Fused BN affine + ReLU: one scale/shift pass over [B, d_h].
            scale = gamma * jax.lax.rsqrt(var + BN_EPS)   # rsqrt -> EUP
            shift = beta - mean * scale
            h = jnp.maximum(h * scale + shift, 0.0)
            h_mm = h.astype(jnp.bfloat16)            # operand for next matmul

        if return_embed:
            out_ref[...] = h
        else:
            w_lin = p[idx][...]                      # [d_h_pad, c_pad] bf16
            b_lin = p[idx + 1][...]                  # [1, c_pad] f32
            out_ref[...] = jnp.dot(h_mm, w_lin,
                                   preferred_element_type=jnp.float32) + b_lin

    return kernel


def fnn_forward(x, hidden_params, linear_w, linear_b, *, return_embed=False):
    """Runs the fused FNN forward pass in one pallas_call.

    x             : [B, dim_input] f32
    hidden_params : list of (w [d_in, d_hidden], gamma [1, d_hidden],
                             beta [1, d_hidden])
    linear_w      : [d_hidden, num_classes]  (already transposed vs nn.Linear)
    linear_b      : [num_classes]
    return_embed  : if True, return hidden features instead of logits.
    """
    num_hidden_layers = len(hidden_params)
    batch, dim_input = x.shape
    dim_hidden = hidden_params[0][0].shape[1]
    num_classes = linear_w.shape[1]

    # Lane/sublane-aligned padded sizes.
    b_pad = _round_up(batch, 8)
    din_pad = _round_up(dim_input, 128)
    dh_pad = _round_up(dim_hidden, 128)
    c_pad = _round_up(num_classes, 128)

    # Padded inputs. Zero padding is exact: padded weight rows/cols, gamma=0,
    # beta=0 keep padded features at 0 through every layer, and the masked
    # statistics reduction ignores padded batch rows.
    x_p = jnp.zeros((b_pad, din_pad), jnp.bfloat16)
    x_p = x_p.at[:batch, :dim_input].set(x.astype(jnp.bfloat16))

    mask = jnp.zeros((8, b_pad), jnp.float32)
    mask = mask.at[0, :batch].set(1.0 / batch)       # row 0 = 1/B on real rows

    inputs = [mask, x_p]
    d_in, d_in_pad = dim_input, din_pad
    for (w, g, b) in hidden_params:
        w_p = jnp.zeros((d_in_pad, dh_pad), jnp.bfloat16)
        w_p = w_p.at[:d_in, :dim_hidden].set(w.astype(jnp.bfloat16))
        g_p = jnp.zeros((1, dh_pad), jnp.float32)
        g_p = g_p.at[:, :dim_hidden].set(g.reshape(1, -1))
        b_p = jnp.zeros((1, dh_pad), jnp.float32)
        b_p = b_p.at[:, :dim_hidden].set(b.reshape(1, -1))
        inputs += [w_p, g_p, b_p]
        d_in, d_in_pad = dim_hidden, dh_pad

    if not return_embed:
        wl_p = jnp.zeros((dh_pad, c_pad), jnp.bfloat16)
        wl_p = wl_p.at[:dim_hidden, :num_classes].set(
            linear_w.astype(jnp.bfloat16))
        bl_p = jnp.zeros((1, c_pad), jnp.float32)
        bl_p = bl_p.at[:, :num_classes].set(linear_b.reshape(1, -1))
        inputs += [wl_p, bl_p]
        out_cols_pad, out_cols = c_pad, num_classes
    else:
        out_cols_pad, out_cols = dh_pad, dim_hidden

    # Everything fits in VMEM: each array is one full block, no grid.
    def _full_spec(a):
        nd = a.ndim
        return pl.BlockSpec(a.shape, lambda *_args, _nd=nd: (0,) * _nd)

    in_specs = [_full_spec(a) for a in inputs]
    out_spec = pl.BlockSpec((b_pad, out_cols_pad), lambda: (0, 0))

    # Size the scoped VMEM limit from the actual resident bytes (x2 margin),
    # clamped to the 64 MiB physical VMEM of v7x.
    total_bytes = sum(int(a.size) * a.dtype.itemsize for a in inputs)
    total_bytes += b_pad * out_cols_pad * 4          # f32 output block
    total_bytes += 2 * b_pad * dh_pad * 4            # live activations (f32+bf16)
    vmem_limit = int(min(max(2 * total_bytes + (2 << 20), 16 << 20), 64 << 20))

    kernel = _make_fnn_kernel(num_hidden_layers, return_embed)
    out_p = pl.pallas_call(
        kernel,
        out_shape=jax.ShapeDtypeStruct((b_pad, out_cols_pad), jnp.float32),
        in_specs=in_specs,
        out_specs=out_spec,
        compiler_params=pltpu.CompilerParams(vmem_limit_bytes=vmem_limit),
    )(*inputs)

    return out_p[:batch, :out_cols]


def init_fnn_params(key, dim_input, dim_hidden, num_hidden_layers, num_classes):
    """Deterministic synthetic parameter init (shapes match the PyTorch FNN)."""
    hidden_params = []
    d_in = dim_input
    for _ in range(num_hidden_layers):
        key, wk = jax.random.split(key)
        # nn.Linear weight is [out, in]; we store the transposed [in, out].
        bound = 1.0 / jnp.sqrt(jnp.float32(d_in))
        w = jax.random.uniform(wk, (d_in, dim_hidden), jnp.float32,
                               minval=-bound, maxval=bound)
        gamma = jnp.ones((1, dim_hidden), jnp.float32)   # BatchNorm1d.weight
        beta = jnp.zeros((1, dim_hidden), jnp.float32)   # BatchNorm1d.bias
        hidden_params.append((w, gamma, beta))
        d_in = dim_hidden

    key, wk, bk = jax.random.split(key, 3)
    bound = 1.0 / jnp.sqrt(jnp.float32(dim_hidden))
    linear_w = jax.random.uniform(wk, (dim_hidden, num_classes), jnp.float32,
                                  minval=-bound, maxval=bound)
    linear_b = jax.random.uniform(bk, (num_classes,), jnp.float32,
                                  minval=-bound, maxval=bound)
    return hidden_params, linear_w, linear_b


def _reference_forward_f32(x, hidden_params, linear_w, linear_b):
    """Pure-f32 JAX reference (PyTorch FNN forward, BN in train mode)."""
    h = x
    for (w, g, b) in hidden_params:
        h = h @ w
        mean = jnp.mean(h, axis=0, keepdims=True)
        var = jnp.mean((h - mean) ** 2, axis=0, keepdims=True)
        h = (h - mean) * jax.lax.rsqrt(var + BN_EPS)
        h = h * g + b
        h = jnp.maximum(h, 0.0)
    return h @ linear_w + linear_b[None, :]


def _reference_forward_matched(x, hidden_params, linear_w, linear_b,
                               return_embed=False):
    """Reference mirroring the kernel's mixed precision (bf16 MXU operands)."""
    h_mm = x.astype(jnp.bfloat16)
    h = None
    for (w, g, b) in hidden_params:
        h = jnp.dot(h_mm, w.astype(jnp.bfloat16),
                    preferred_element_type=jnp.float32)
        mean = jnp.mean(h, axis=0, keepdims=True)
        var = jnp.maximum(jnp.mean(h * h, axis=0, keepdims=True) - mean * mean,
                          0.0)
        scale = g * jax.lax.rsqrt(var + BN_EPS)
        shift = b - mean * scale
        h = jnp.maximum(h * scale + shift, 0.0)
        h_mm = h.astype(jnp.bfloat16)
    if return_embed:
        return h
    return jnp.dot(h_mm, linear_w.astype(jnp.bfloat16),
                   preferred_element_type=jnp.float32) + linear_b[None, :]


if __name__ == "__main__":
    # Small shapes consistent with the module's forward ([batch, dim_input]).
    batch = 8
    dim_input = 16
    dim_hidden = 32
    num_hidden_layers = 3
    num_classes = 8

    key = jax.random.PRNGKey(0)
    key, xk = jax.random.split(key)
    x = jax.random.normal(xk, (batch, dim_input), jnp.float32)

    hidden_params, linear_w, linear_b = init_fnn_params(
        key, dim_input, dim_hidden, num_hidden_layers, num_classes)

    # Logits path.
    y = fnn_forward(x, hidden_params, linear_w, linear_b)
    y = jax.block_until_ready(y)
    assert y.shape == (batch, num_classes)

    # Tight check vs a reference using the same mixed precision as the kernel.
    y_matched = _reference_forward_matched(x, hidden_params, linear_w, linear_b)
    err_m = float(jnp.max(jnp.abs(y - y_matched)))
    assert err_m < 2e-3, f"mismatch vs matched-precision reference: {err_m}"

    # Looser check vs the pure-f32 reference (bf16 MXU operand quantization).
    y_f32 = _reference_forward_f32(x, hidden_params, linear_w, linear_b)
    assert jnp.allclose(y, y_f32, atol=5e-2, rtol=5e-2), (
        f"mismatch vs f32 reference: {float(jnp.max(jnp.abs(y - y_f32)))}")

    # Embed path (return_embed=True).
    e = fnn_forward(x, hidden_params, linear_w, linear_b, return_embed=True)
    e = jax.block_until_ready(e)
    assert e.shape == (batch, dim_hidden)
    e_matched = _reference_forward_matched(x, hidden_params, linear_w, linear_b,
                                           return_embed=True)
    err_e = float(jnp.max(jnp.abs(e - e_matched)))
    assert err_e < 2e-3, f"embed mismatch vs matched-precision ref: {err_e}"

    print("KERNEL_OK")
</pallas_src>

<mosaic_0001>
module attributes {stable_mosaic.version = 11 : i64} {
  func.func @kernel(%arg0: memref<8x8xf32, #tpu.memory_space<vmem>>, %arg1: memref<8x128xbf16, #tpu.memory_space<vmem>>, %arg2: memref<128x128xbf16, #tpu.memory_space<vmem>>, %arg3: memref<1x128xf32, #tpu.memory_space<vmem>>, %arg4: memref<1x128xf32, #tpu.memory_space<vmem>>, %arg5: memref<128x128xbf16, #tpu.memory_space<vmem>>, %arg6: memref<1x128xf32, #tpu.memory_space<vmem>>, %arg7: memref<1x128xf32, #tpu.memory_space<vmem>>, %arg8: memref<128x128xbf16, #tpu.memory_space<vmem>>, %arg9: memref<1x128xf32, #tpu.memory_space<vmem>>, %arg10: memref<1x128xf32, #tpu.memory_space<vmem>>, %arg11: memref<128x128xbf16, #tpu.memory_space<vmem>>, %arg12: memref<1x128xf32, #tpu.memory_space<vmem>>, %arg13: memref<8x128xf32, #tpu.memory_space<vmem>>) attributes {dimension_semantics = [], scalar_prefetch = 0 : i64, scratch_operands = 0 : i64, tpu.core_type = #tpu.core_type<tc>} {
    %c0 = arith.constant 0 : index
    %c0_0 = arith.constant 0 : index
    %0 = vector.load %arg0[%c0, %c0_0] : memref<8x8xf32, #tpu.memory_space<vmem>>, vector<8x8xf32>
    %c0_1 = arith.constant 0 : index
    %c0_2 = arith.constant 0 : index
    %1 = vector.load %arg1[%c0_1, %c0_2] : memref<8x128xbf16, #tpu.memory_space<vmem>>, vector<8x128xbf16>
    %c0_3 = arith.constant 0 : index
    %c0_4 = arith.constant 0 : index
    %2 = vector.load %arg2[%c0_3, %c0_4] : memref<128x128xbf16, #tpu.memory_space<vmem>>, vector<128x128xbf16>
    %c0_5 = arith.constant 0 : index
    %c0_6 = arith.constant 0 : index
    %3 = vector.load %arg3[%c0_5, %c0_6] : memref<1x128xf32, #tpu.memory_space<vmem>>, vector<1x128xf32>
    %c0_7 = arith.constant 0 : index
    %c0_8 = arith.constant 0 : index
    %4 = vector.load %arg4[%c0_7, %c0_8] : memref<1x128xf32, #tpu.memory_space<vmem>>, vector<1x128xf32>
    %cst = arith.constant dense<0.000000e+00> : vector<8x128xf32>
    %5 = tpu.matmul %1, %2, %cst {dimension_numbers = #tpu.dot_dimension_numbers<[1], [0], [0], [1], [0, 0, 1, 1], [], []>} : vector<8x128xbf16>, vector<128x128xbf16>, vector<8x128xf32> -> vector<8x128xf32>
    %cst_9 = arith.constant dense<0.000000e+00> : vector<8x128xf32>
    %6 = tpu.matmul %0, %5, %cst_9 {dimension_numbers = #tpu.dot_dimension_numbers<[1], [0], [0], [1], [0, 0, 1, 1], [], []>} : vector<8x8xf32>, vector<8x128xf32>, vector<8x128xf32> -> vector<8x128xf32>
    %7 = vector.extract_strided_slice %6 {offsets = [0, 0], sizes = [1, 128], strides = [1, 1]} : vector<8x128xf32> to vector<1x128xf32>
    %8 = arith.mulf %5, %5 : vector<8x128xf32>
    %cst_10 = arith.constant dense<0.000000e+00> : vector<8x128xf32>
    %9 = tpu.matmul %0, %8, %cst_10 {dimension_numbers = #tpu.dot_dimension_numbers<[1], [0], [0], [1], [0, 0, 1, 1], [], []>} : vector<8x8xf32>, vector<8x128xf32>, vector<8x128xf32> -> vector<8x128xf32>
    %10 = vector.extract_strided_slice %9 {offsets = [0, 0], sizes = [1, 128], strides = [1, 1]} : vector<8x128xf32> to vector<1x128xf32>
    %11 = arith.mulf %7, %7 : vector<1x128xf32>
    %12 = arith.subf %10, %11 : vector<1x128xf32>
    %cst_11 = arith.constant 0.000000e+00 : f32
    %13 = vector.broadcast %cst_11 : f32 to vector<1x128xf32>
    %14 = arith.maximumf %12, %13 : vector<1x128xf32>
    %cst_12 = arith.constant 9.99999974E-6 : f32
    %15 = vector.broadcast %cst_12 : f32 to vector<1x128xf32>
    %16 = arith.addf %14, %15 : vector<1x128xf32>
    %17 = math.rsqrt %16 : vector<1x128xf32>
    %18 = arith.mulf %3, %17 : vector<1x128xf32>
    %19 = arith.mulf %7, %18 : vector<1x128xf32>
    %20 = arith.subf %4, %19 : vector<1x128xf32>
    %21 = vector.broadcast %18 : vector<1x128xf32> to vector<8x128xf32>
    %22 = arith.mulf %5, %21 : vector<8x128xf32>
    %23 = vector.broadcast %20 : vector<1x128xf32> to vector<8x128xf32>
    %24 = arith.addf %22, %23 : vector<8x128xf32>
    %cst_13 = arith.constant 0.000000e+00 : f32
    %25 = vector.broadcast %cst_13 : f32 to vector<8x128xf32>
    %26 = arith.maximumf %24, %25 : vector<8x128xf32>
    %27 = arith.truncf %26 : vector<8x128xf32> to vector<8x128xbf16>
    %c0_14 = arith.constant 0 : index
    %c0_15 = arith.constant 0 : index
    %28 = vector.load %arg5[%c0_14, %c0_15] : memref<128x128xbf16, #tpu.memory_space<vmem>>, vector<128x128xbf16>
    %c0_16 = arith.constant 0 : index
    %c0_17 = arith.constant 0 : index
    %29 = vector.load %arg6[%c0_16, %c0_17] : memref<1x128xf32, #tpu.memory_space<vmem>>, vector<1x128xf32>
    %c0_18 = arith.constant 0 : index
    %c0_19 = arith.constant 0 : index
    %30 = vector.load %arg7[%c0_18, %c0_19] : memref<1x128xf32, #tpu.memory_space<vmem>>, vector<1x128xf32>
    %cst_20 = arith.constant dense<0.000000e+00> : vector<8x128xf32>
    %31 = tpu.matmul %27, %28, %cst_20 {dimension_numbers = #tpu.dot_dimension_numbers<[1], [0], [0], [1], [0, 0, 1, 1], [], []>} : vector<8x128xbf16>, vector<128x128xbf16>, vector<8x128xf32> -> vector<8x128xf32>
    %cst_21 = arith.constant dense<0.000000e+00> : vector<8x128xf32>
    %32 = tpu.matmul %0, %31, %cst_21 {dimension_numbers = #tpu.dot_dimension_numbers<[1], [0], [0], [1], [0, 0, 1, 1], [], []>} : vector<8x8xf32>, vector<8x128xf32>, vector<8x128xf32> -> vector<8x128xf32>
    %33 = vector.extract_strided_slice %32 {offsets = [0, 0], sizes = [1, 128], strides = [1, 1]} : vector<8x128xf32> to vector<1x128xf32>
    %34 = arith.mulf %31, %31 : vector<8x128xf32>
    %cst_22 = arith.constant dense<0.000000e+00> : vector<8x128xf32>
    %35 = tpu.matmul %0, %34, %cst_22 {dimension_numbers = #tpu.dot_dimension_numbers<[1], [0], [0], [1], [0, 0, 1, 1], [], []>} : vector<8x8xf32>, vector<8x128xf32>, vector<8x128xf32> -> vector<8x128xf32>
    %36 = vector.extract_strided_slice %35 {offsets = [0, 0], sizes = [1, 128], strides = [1, 1]} : vector<8x128xf32> to vector<1x128xf32>
    %37 = arith.mulf %33, %33 : vector<1x128xf32>
    %38 = arith.subf %36, %37 : vector<1x128xf32>
    %cst_23 = arith.constant 0.000000e+00 : f32
    %39 = vector.broadcast %cst_23 : f32 to vector<1x128xf32>
    %40 = arith.maximumf %38, %39 : vector<1x128xf32>
    %cst_24 = arith.constant 9.99999974E-6 : f32
    %41 = vector.broadcast %cst_24 : f32 to vector<1x128xf32>
    %42 = arith.addf %40, %41 : vector<1x128xf32>
    %43 = math.rsqrt %42 : vector<1x128xf32>
    %44 = arith.mulf %29, %43 : vector<1x128xf32>
    %45 = arith.mulf %33, %44 : vector<1x128xf32>
    %46 = arith.subf %30, %45 : vector<1x128xf32>
    %47 = vector.broadcast %44 : vector<1x128xf32> to vector<8x128xf32>
    %48 = arith.mulf %31, %47 : vector<8x128xf32>
    %49 = vector.broadcast %46 : vector<1x128xf32> to vector<8x128xf32>
    %50 = arith.addf %48, %49 : vector<8x128xf32>
    %cst_25 = arith.constant 0.000000e+00 : f32
    %51 = vector.broadcast %cst_25 : f32 to vector<8x128xf32>
    %52 = arith.maximumf %50, %51 : vector<8x128xf32>
    %53 = arith.truncf %52 : vector<8x128xf32> to vector<8x128xbf16>
    %c0_26 = arith.constant 0 : index
    %c0_27 = arith.constant 0 : index
    %54 = vector.load %arg8[%c0_26, %c0_27] : memref<128x128xbf16, #tpu.memory_space<vmem>>, vector<128x128xbf16>
    %c0_28 = arith.constant 0 : index
    %c0_29 = arith.constant 0 : index
    %55 = vector.load %arg9[%c0_28, %c0_29] : memref<1x128xf32, #tpu.memory_space<vmem>>, vector<1x128xf32>
    %c0_30 = arith.constant 0 : index
    %c0_31 = arith.constant 0 : index
    %56 = vector.load %arg10[%c0_30, %c0_31] : memref<1x128xf32, #tpu.memory_space<vmem>>, vector<1x128xf32>
    %cst_32 = arith.constant dense<0.000000e+00> : vector<8x128xf32>
    %57 = tpu.matmul %53, %54, %cst_32 {dimension_numbers = #tpu.dot_dimension_numbers<[1], [0], [0], [1], [0, 0, 1, 1], [], []>} : vector<8x128xbf16>, vector<128x128xbf16>, vector<8x128xf32> -> vector<8x128xf32>
    %cst_33 = arith.constant dense<0.000000e+00> : vector<8x128xf32>
    %58 = tpu.matmul %0, %57, %cst_33 {dimension_numbers = #tpu.dot_dimension_numbers<[1], [0], [0], [1], [0, 0, 1, 1], [], []>} : vector<8x8xf32>, vector<8x128xf32>, vector<8x128xf32> -> vector<8x128xf32>
    %59 = vector.extract_strided_slice %58 {offsets = [0, 0], sizes = [1, 128], strides = [1, 1]} : vector<8x128xf32> to vector<1x128xf32>
    %60 = arith.mulf %57, %57 : vector<8x128xf32>
    %cst_34 = arith.constant dense<0.000000e+00> : vector<8x128xf32>
    %61 = tpu.matmul %0, %60, %cst_34 {dimension_numbers = #tpu.dot_dimension_numbers<[1], [0], [0], [1], [0, 0, 1, 1], [], []>} : vector<8x8xf32>, vector<8x128xf32>, vector<8x128xf32> -> vector<8x128xf32>
    %62 = vector.extract_strided_slice %61 {offsets = [0, 0], sizes = [1, 128], strides = [1, 1]} : vector<8x128xf32> to vector<1x128xf32>
    %63 = arith.mulf %59, %59 : vector<1x128xf32>
    %64 = arith.subf %62, %63 : vector<1x128xf32>
    %cst_35 = arith.constant 0.000000e+00 : f32
    %65 = vector.broadcast %cst_35 : f32 to vector<1x128xf32>
    %66 = arith.maximumf %64, %65 : vector<1x128xf32>
    %cst_36 = arith.constant 9.99999974E-6 : f32
    %67 = vector.broadcast %cst_36 : f32 to vector<1x128xf32>
    %68 = arith.addf %66, %67 : vector<1x128xf32>
    %69 = math.rsqrt %68 : vector<1x128xf32>
    %70 = arith.mulf %55, %69 : vector<1x128xf32>
    %71 = arith.mulf %59, %70 : vector<1x128xf32>
    %72 = arith.subf %56, %71 : vector<1x128xf32>
    %73 = vector.broadcast %70 : vector<1x128xf32> to vector<8x128xf32>
    %74 = arith.mulf %57, %73 : vector<8x128xf32>
    %75 = vector.broadcast %72 : vector<1x128xf32> to vector<8x128xf32>
    %76 = arith.addf %74, %75 : vector<8x128xf32>
    %cst_37 = arith.constant 0.000000e+00 : f32
    %77 = vector.broadcast %cst_37 : f32 to vector<8x128xf32>
    %78 = arith.maximumf %76, %77 : vector<8x128xf32>
    %79 = arith.truncf %78 : vector<8x128xf32> to vector<8x128xbf16>
    %c0_38 = arith.constant 0 : index
    %c0_39 = arith.constant 0 : index
    %80 = vector.load %arg11[%c0_38, %c0_39] : memref<128x128xbf16, #tpu.memory_space<vmem>>, vector<128x128xbf16>
    %c0_40 = arith.constant 0 : index
    %c0_41 = arith.constant 0 : index
    %81 = vector.load %arg12[%c0_40, %c0_41] : memref<1x128xf32, #tpu.memory_space<vmem>>, vector<1x128xf32>
    %cst_42 = arith.constant dense<0.000000e+00> : vector<8x128xf32>
    %82 = tpu.matmul %79, %80, %cst_42 {dimension_numbers = #tpu.dot_dimension_numbers<[1], [0], [0], [1], [0, 0, 1, 1], [], []>} : vector<8x128xbf16>, vector<128x128xbf16>, vector<8x128xf32> -> vector<8x128xf32>
    %83 = vector.broadcast %81 : vector<1x128xf32> to vector<8x128xf32>
    %84 = arith.addf %82, %83 : vector<8x128xf32>
    %c0_43 = arith.constant 0 : index
    %c0_44 = arith.constant 0 : index
    %85 = vector.load %arg13[%c0_43, %c0_44] : memref<8x128xf32, #tpu.memory_space<vmem>>, vector<8x128xf32>
    tpu.vector_store %arg13[%c0_43, %c0_44], %84 {strides = array<i32>} : memref<8x128xf32, #tpu.memory_space<vmem>>, vector<8x128xf32>,
    return
  }
}

</mosaic_0001>

<llo_original>
// kernel: tpu_custom_call.1
$region0: #{tpu_custom_call.1}
  #allocation0 [shape = 'u32[]', space=smem, size = 0x4, offset = 0x4, fixed_abs, tag = 'smem constant byte address 0x4 - core index']
  #allocation1 [shape = 'u32[144,128]{1,0:T(1,128)}', space=vmem, size = 0x12000, scoped, tag = 'internal scratch']
  %s0 = inlined_call_operand.hbm [shape: f32[8,8], index: 0, kind: input, shape index: {}]
  %s1 = inlined_call_operand.hbm [shape: bf16[8,128], index: 1, kind: input, shape index: {}]
  %s2 = inlined_call_operand.hbm [shape: bf16[128,128], index: 2, kind: input, shape index: {}]
  %s3 = inlined_call_operand.vmem [shape: f32[1,128], index: 3, kind: input, shape index: {}]
  %s4 = inlined_call_operand.vmem [shape: f32[1,128], index: 4, kind: input, shape index: {}]
  %s5 = inlined_call_operand.hbm [shape: bf16[128,128], index: 5, kind: input, shape index: {}]
  %s6 = inlined_call_operand.vmem [shape: f32[1,128], index: 6, kind: input, shape index: {}]
  %s7 = inlined_call_operand.vmem [shape: f32[1,128], index: 7, kind: input, shape index: {}]
  %s8 = inlined_call_operand.hbm [shape: bf16[128,128], index: 8, kind: input, shape index: {}]
  %s9 = inlined_call_operand.vmem [shape: f32[1,128], index: 9, kind: input, shape index: {}]
  %s10 = inlined_call_operand.vmem [shape: f32[1,128], index: 10, kind: input, shape index: {}]
  %s11 = inlined_call_operand.hbm [shape: bf16[128,128], index: 11, kind: input, shape index: {}]
  %s12 = inlined_call_operand.vmem [shape: f32[1,128], index: 12, kind: input, shape index: {}]
  %s13 = inlined_call_operand.hbm [shape: f32[8,128], index: 13, kind: output, shape index: {}]
  %s14 = sld [smem:[#allocation0]]
  $region86: #{tpu_custom_call.1} parent=0
    _
  %s16 = ssub.s32 1, %s14
  %s17 = scalar_select 0, %s16, %s14
  $region1: #{tpu_custom_call.1} parent=0
    #allocation2 [shape = 'u8[4096]{0}', space=vmem, size = 0x1000, scoped, tag = 'input window, operand 0, single buffered']
    #allocation3 [shape = 's32[1]{0}', space=sflag, size = 0x4, scoped, tag = 'scoped memory for tpu_custom_call.1']
    #allocation4 [shape = 's32[1]{0}', space=sflag, size = 0x4, scoped, tag = 'scoped memory for tpu_custom_call.1']
    #allocation5 [shape = 'u8[2048]{0}', space=vmem, size = 0x800, scoped, tag = 'input window, operand 1, single buffered']
    #allocation6 [shape = 's32[1]{0}', space=sflag, size = 0x4, scoped, tag = 'scoped memory for tpu_custom_call.1']
    #allocation7 [shape = 'u8[32768]{0}', space=vmem, size = 0x8000, scoped, tag = 'input window, operand 2, single buffered']
    #allocation8 [shape = 'u8[32768]{0}', space=vmem, size = 0x8000, scoped, tag = 'input window, operand 5, single buffered']
    #allocation9 [shape = 's32[1]{0}', space=sflag, size = 0x4, scoped, tag = 'scoped memory for tpu_custom_call.1']
    #allocation10 [shape = 'u8[32768]{0}', space=vmem, size = 0x8000, scoped, tag = 'input window, operand 8, single buffered']
    #allocation11 [shape = 'u8[32768]{0}', space=vmem, size = 0x8000, scoped, tag = 'input window, operand 11, single buffered']
    #allocation12 [shape = 's32[1]{0}', space=sflag, size = 0x4, scoped, tag = 'scoped memory for tpu_custom_call.1']
    #allocation13 [shape = 'u8[4096]{0}', space=vmem, size = 0x1000, scoped, tag = 'output window, operand 0, single buffered']
    %18 = vsyncpa [#allocation3], 0
    %19 = vsyncpa [#allocation6], 0
    %20 = vsyncpa [#allocation9], 0
    %21 = vsyncpa [#allocation12], 0
    %22 = vsyncpa [#allocation4], 0
    // Predicated region
    $region2: #{tpu_custom_call.1} parent=1 // pred_check
      _
    $region3: #{tpu_custom_call.1} parent=1 // pred_check_branch
      %24 = sbr.rel (0) target = $region5
    $region4: #{tpu_custom_call.1} parent=1 // pred_region
      %s26 = ssub.s32 128, 128
      %27 = vsyncadd [#allocation3], %s26
      %s29 = sshll.u32 [#allocation2], 4
      %s30 = int_to_ptr.vmem [resolvable:$true] %s29
      %32 = dma.hbm_to_vmem [thread:$0]  %s0, 128, %s30, [#allocation3]
    $region5: #{tpu_custom_call.1} parent=1 // pred_fallthru
      _
    // Predicated region
    $region6: #{tpu_custom_call.1} parent=1 // pred_check
      _
    $region7: #{tpu_custom_call.1} parent=1 // pred_check_branch
      %34 = sbr.rel (0) target = $region9
    $region8: #{tpu_custom_call.1} parent=1 // pred_region
      %s36 = ssub.s32 64, 64
      %37 = vsyncadd [#allocation6], %s36
      %s39 = sshll.u32 [#allocation5], 4
      %s40 = int_to_ptr.vmem [resolvable:$true] %s39
      %42 = dma.hbm_to_vmem [thread:$0]  %s1, 64, %s40, [#allocation6]
    $region9: #{tpu_custom_call.1} parent=1 // pred_fallthru
      _
    // Predicated region
    $region10: #{tpu_custom_call.1} parent=1 // pred_check
      _
    $region11: #{tpu_custom_call.1} parent=1 // pred_check_branch
      %44 = sbr.rel (0) target = $region13
    $region12: #{tpu_custom_call.1} parent=1 // pred_region
      %s46 = ssub.s32 1024, 1024
      %47 = vsyncadd [#allocation6], %s46
      %s48 = sshll.u32 [#allocation7], 4
      %s49 = int_to_ptr.vmem [resolvable:$true] %s48
      %54 = dma.hbm_to_vmem [thread:$0]  %s2, 1024, %s49, [#allocation6], 64, 64, 4
    $region13: #{tpu_custom_call.1} parent=1 // pred_fallthru
      _
    // Predicated region
    $region14: #{tpu_custom_call.1} parent=1 // pred_check
      _
    $region15: #{tpu_custom_call.1} parent=1 // pred_check_branch
      %56 = sbr.rel (0) target = $region17
    $region16: #{tpu_custom_call.1} parent=1 // pred_region
      _
    $region17: #{tpu_custom_call.1} parent=1 // pred_fallthru
      _
    // Predicated region
    $region18: #{tpu_custom_call.1} parent=1 // pred_check
      _
    $region19: #{tpu_custom_call.1} parent=1 // pred_check_branch
      %58 = sbr.rel (0) target = $region21
    $region20: #{tpu_custom_call.1} parent=1 // pred_region
      _
    $region21: #{tpu_custom_call.1} parent=1 // pred_fallthru
      _
    // Predicated region
    $region22: #{tpu_custom_call.1} parent=1 // pred_check
      _
    $region23: #{tpu_custom_call.1} parent=1 // pred_check_branch
      %60 = sbr.rel (0) target = $region25
    $region24: #{tpu_custom_call.1} parent=1 // pred_region
      %s62 = ssub.s32 1024, 1024
      %63 = vsyncadd [#allocation9], %s62
      %s64 = sshll.u32 [#allocation8], 4
      %s65 = int_to_ptr.vmem [resolvable:$true] %s64
      %70 = dma.hbm_to_vmem [thread:$0]  %s5, 1024, %s65, [#allocation9], 64, 64, 4
    $region25: #{tpu_custom_call.1} parent=1 // pred_fallthru
      _
    // Predicated region
    $region26: #{tpu_custom_call.1} parent=1 // pred_check
      _
    $region27: #{tpu_custom_call.1} parent=1 // pred_check_branch
      %72 = sbr.rel (0) target = $region29
    $region28: #{tpu_custom_call.1} parent=1 // pred_region
      _
    $region29: #{tpu_custom_call.1} parent=1 // pred_fallthru
      _
    // Predicated region
    $region30: #{tpu_custom_call.1} parent=1 // pred_check
      _
    $region31: #{tpu_custom_call.1} parent=1 // pred_check_branch
      %74 = sbr.rel (0) target = $region33
    $region32: #{tpu_custom_call.1} parent=1 // pred_region
      _
    $region33: #{tpu_custom_call.1} parent=1 // pred_fallthru
      _
    // Predicated region
    $region34: #{tpu_custom_call.1} parent=1 // pred_check
      _
    $region35: #{tpu_custom_call.1} parent=1 // pred_check_branch
      %76 = sbr.rel (0) target = $region37
    $region36: #{tpu_custom_call.1} parent=1 // pred_region
      %s78 = ssub.s32 1024, 1024
      %79 = vsyncadd [#allocation9], %s78
      %s80 = sshll.u32 [#allocation10], 4
      %s81 = int_to_ptr.vmem [resolvable:$true] %s80
      %86 = dma.hbm_to_vmem [thread:$0]  %s8, 1024, %s81, [#allocation9], 64, 64, 4
    $region37: #{tpu_custom_call.1} parent=1 // pred_fallthru
      _
    // Predicated region
    $region38: #{tpu_custom_call.1} parent=1 // pred_check
      _
    $region39: #{tpu_custom_call.1} parent=1 // pred_check_branch
      %88 = sbr.rel (0) target = $region41
    $region40: #{tpu_custom_call.1} parent=1 // pred_region
      _
    $region41: #{tpu_custom_call.1} parent=1 // pred_fallthru
      _
    // Predicated region
    $region42: #{tpu_custom_call.1} parent=1 // pred_check
      _
    $region43: #{tpu_custom_call.1} parent=1 // pred_check_branch
      %90 = sbr.rel (0) target = $region45
    $region44: #{tpu_custom_call.1} parent=1 // pred_region
      _
    $region45: #{tpu_custom_call.1} parent=1 // pred_fallthru
      _
    // Predicated region
    $region46: #{tpu_custom_call.1} parent=1 // pred_check
      _
    $region47: #{tpu_custom_call.1} parent=1 // pred_check_branch
      %92 = sbr.rel (0) target = $region49
    $region48: #{tpu_custom_call.1} parent=1 // pred_region
      %s94 = ssub.s32 1024, 1024
      %95 = vsyncadd [#allocation12], %s94
      %s96 = sshll.u32 [#allocation11], 4
      %s97 = int_to_ptr.vmem [resolvable:$true] %s96
      %102 = dma.hbm_to_vmem [thread:$0]  %s11, 1024, %s97, [#allocation12], 64, 64, 4
    $region49: #{tpu_custom_call.1} parent=1 // pred_fallthru
      _
    // Predicated region
    $region50: #{tpu_custom_call.1} parent=1 // pred_check
      _
    $region51: #{tpu_custom_call.1} parent=1 // pred_check_branch
      %104 = sbr.rel (0) target = $region53
    $region52: #{tpu_custom_call.1} parent=1 // pred_region
      _
    $region53: #{tpu_custom_call.1} parent=1 // pred_fallthru
      _
    // Predicated region
    $region54: #{tpu_custom_call.1} parent=1 // pred_check
      _
    $region55: #{tpu_custom_call.1} parent=1 // pred_check_branch
      %106 = sbr.rel (0) target = $region57
    $region56: #{tpu_custom_call.1} parent=1 // pred_region
      %107 = dma.done [#allocation3], 128
    $region57: #{tpu_custom_call.1} parent=1 // pred_fallthru
      _
    // Predicated region
    $region58: #{tpu_custom_call.1} parent=1 // pred_check
      _
    $region59: #{tpu_custom_call.1} parent=1 // pred_check_branch
      %109 = sbr.rel (0) target = $region61
    $region60: #{tpu_custom_call.1} parent=1 // pred_region
      %110 = dma.done [#allocation6], 64
    $region61: #{tpu_custom_call.1} parent=1 // pred_fallthru
      _
    // Predicated region
    $region62: #{tpu_custom_call.1} parent=1 // pred_check
      _
    $region63: #{tpu_custom_call.1} parent=1 // pred_check_branch
      %112 = sbr.rel (0) target = $region65
    $region64: #{tpu_custom_call.1} parent=1 // pred_region
      %113 = dma.done [#allocation6], 1024
    $region65: #{tpu_custom_call.1} parent=1 // pred_fallthru
      _
    // Predicated region
    $region66: #{tpu_custom_call.1} parent=1 // pred_check
      _
    $region67: #{tpu_custom_call.1} parent=1 // pred_check_branch
      %115 = sbr.rel (0) target = $region69
    $region68: #{tpu_custom_call.1} parent=1 // pred_region
      %116 = dma.done [#allocation9], 1024
    $region69: #{tpu_custom_call.1} parent=1 // pred_fallthru
      _
    // Predicated region
    $region70: #{tpu_custom_call.1} parent=1 // pred_check
      _
    $region71: #{tpu_custom_call.1} parent=1 // pred_check_branch
      %118 = sbr.rel (0) target = $region73
    $region72: #{tpu_custom_call.1} parent=1 // pred_region
      %119 = dma.done [#allocation9], 1024
    $region73: #{tpu_custom_call.1} parent=1 // pred_fallthru
      _
    // Predicated region
    $region74: #{tpu_custom_call.1} parent=1 // pred_check
      _
    $region75: #{tpu_custom_call.1} parent=1 // pred_check_branch
      %121 = sbr.rel (0) target = $region77
    $region76: #{tpu_custom_call.1} parent=1 // pred_region
      %122 = dma.done [#allocation12], 1024
    $region77: #{tpu_custom_call.1} parent=1 // pred_fallthru
      _
    %v124 = vld [vmem:[#allocation2] sm:$0xff]
    %v125 = vld [vmem:[#allocation5] sm:$0xf]
    %v126 = vld [vmem:[#allocation7] sm:$0xf]
    %v127 = vld [vmem:[#allocation7 + $0x4] sm:$0xf]
    %v128 = vld [vmem:[#allocation7 + $0x8] sm:$0xf]
    %v129 = vld [vmem:[#allocation7 + $0xc] sm:$0xf]
    %v130 = vld [vmem:[#allocation7 + $0x10] sm:$0xf]
    %v131 = vld [vmem:[#allocation7 + $0x14] sm:$0xf]
    %v132 = vld [vmem:[#allocation7 + $0x18] sm:$0xf]
    %v133 = vld [vmem:[#allocation7 + $0x1c] sm:$0xf]
    %v134 = vld [vmem:[#allocation7 + $0x20] sm:$0xf]
    %v135 = vld [vmem:[#allocation7 + $0x24] sm:$0xf]
    %v136 = vld [vmem:[#allocation7 + $0x28] sm:$0xf]
    %v137 = vld [vmem:[#allocation7 + $0x2c] sm:$0xf]
    %v138 = vld [vmem:[#allocation7 + $0x30] sm:$0xf]
    %v139 = vld [vmem:[#allocation7 + $0x34] sm:$0xf]
    %v140 = vld [vmem:[#allocation7 + $0x38] sm:$0xf]
    %v141 = vld [vmem:[#allocation7 + $0x3c] sm:$0xf]
    %v142 = vld [vmem:[%s3] sm:$0x1]
    %v143 = vld [vmem:[%s4] sm:$0x1]
    %v160 = vunpack.c.l.b16 %v126
    %v161 = vunpack.c.l.b16 %v127
    %v162 = vunpack.c.l.b16 %v128
    %v163 = vunpack.c.l.b16 %v129
    %v164 = vunpack.c.l.b16 %v130
    %v165 = vunpack.c.l.b16 %v131
    %v166 = vunpack.c.l.b16 %v132
    %v167 = vunpack.c.l.b16 %v133
    %v168 = vunpack.c.l.b16 %v134
    %v169 = vunpack.c.l.b16 %v135
    %v170 = vunpack.c.l.b16 %v136
    %v171 = vunpack.c.l.b16 %v137
    %v172 = vunpack.c.l.b16 %v138
    %v173 = vunpack.c.l.b16 %v139
    %v174 = vunpack.c.l.b16 %v140
    %v175 = vunpack.c.l.b16 %v141
    %v176 = vpack.c.b16 %v161, %v160
    %v177 = vpack.c.b16 %v163, %v162
    %v178 = vpack.c.b16 %v165, %v164
    %v179 = vpack.c.b16 %v167, %v166
    %v180 = vpack.c.b16 %v169, %v168
    %v181 = vpack.c.b16 %v171, %v170
    %v182 = vpack.c.b16 %v173, %v172
    %v183 = vpack.c.b16 %v175, %v174
    %192 = vmatprep.subr.bf16.mxu0 0
    %193 = vmatpush1.bf16.msra.mxu0 %v183
    %194 = vmatprep.subr.bf16.mxu0 0
    %195 = vmatpush1.bf16.msra.mxu0 %v182
    %196 = vmatprep.subr.bf16.mxu0 0
    %197 = vmatpush1.bf16.msra.mxu0 %v181
    %198 = vmatprep.subr.bf16.mxu0 0
    %199 = vmatpush1.bf16.msra.mxu0 %v180
    %200 = vmatprep.subr.bf16.mxu0 0
    %201 = vmatpush1.bf16.msra.mxu0 %v179
    %202 = vmatprep.subr.bf16.mxu0 0
    %203 = vmatpush1.bf16.msra.mxu0 %v178
    %204 = vmatprep.subr.bf16.mxu0 0
    %205 = vmatpush1.bf16.msra.mxu0 %v177
    %206 = vmatprep.subr.bf16.mxu0 0
    %207 = vmatpush1.bf16.msra.mxu0 %v176
    %208 = vmatprep.subr.bf16.mxu0 0
    %209 = vmatpush2.bf16.msra.mxu0 0
    %210 = vmatprep.subr.bf16.mxu0 0
    %211 = vmatpush2.bf16.msra.mxu0 0
    %212 = vmatprep.subr.bf16.mxu0 0
    %213 = vmatpush2.bf16.msra.mxu0 0
    %214 = vmatprep.subr.bf16.mxu0 0
    %215 = vmatpush2.bf16.msra.mxu0 0
    %216 = vmatprep.subr.bf16.mxu0 0
    %217 = vmatpush2.bf16.msra.mxu0 0
    %218 = vmatprep.subr.bf16.mxu0 0
    %219 = vmatpush2.bf16.msra.mxu0 0
    %220 = vmatprep.subr.bf16.mxu0 0
    %221 = vmatpush2.bf16.msra.mxu0 0
    %222 = vmatprep.subr.bf16.mxu0 0
    %223 = vmatpush2.bf16.msra.mxu0 0
    %224 = vmatprep.mubr.bf16.mxu0 0
    %225 = vmatmul.mubr.bf16.gmra.mxu0 %v125
    %v226 = vpop.f32.mrf.mxu0
    %v227 = vadd.f32 0.0, %v226
    %v228 = vpop.f32.mrf.mxu0
    %v229 = vpop.f32.mrf.mxu0
    %v230 = vpop.f32.mrf.mxu0
    %231 = vdwg.mxu0
    %vm232 = vcmask 64512
    %v234 = vsel %vm232, %v124, 0
    %236 = vmatprep.subr.mxu0 0.0
    %237 = vmatpush1.msra.mxu0 0.0
    %238 = vmatprep.subr.mxu0 0.0
    %239 = vmatpush1.msra.mxu0 0.0
    %240 = vmatprep.subr.mxu0 0.0
    %241 = vmatpush1.msra.mxu0 0.0
    %242 = vmatprep.subr.mxu0 0.0
    %243 = vmatpush1.msra.mxu0 0.0
    %244 = vmatprep.subr.mxu0 0.0
    %245 = vmatpush1.msra.mxu0 0.0
    %246 = vmatprep.subr.mxu0 0.0
    %247 = vmatpush1.msra.mxu0 0.0
    %248 = vmatprep.subr.mxu0 0.0
    %249 = vmatpush1.msra.mxu0 0.0
    %250 = vmatprep.subr.mxu0 0.0
    %251 = vmatpush1.msra.mxu0 0.0
    %252 = vmatprep.subr.mxu0 0.0
    %253 = vmatpush1.msra.mxu0 0.0
    %254 = vmatprep.subr.mxu0 0.0
    %255 = vmatpush1.msra.mxu0 0.0
    %256 = vmatprep.subr.mxu0 0.0
    %257 = vmatpush1.msra.mxu0 0.0
    %258 = vmatprep.subr.mxu0 0.0
    %259 = vmatpush1.msra.mxu0 0.0
    %260 = vmatprep.subr.mxu0 0.0
    %261 = vmatpush1.msra.mxu0 0.0
    %262 = vmatprep.subr.mxu0 0.0
    %263 = vmatpush1.msra.mxu0 0.0
    %264 = vmatprep.subr.mxu0 0.0
    %265 = vmatpush1.msra.mxu0 0.0
    %266 = vmatprep.subr.mxu0 0.0
    %267 = vmatpush1.msra.mxu0 %v227
    %268 = vmatprep.subr.mxu0 0.0
    %269 = vmatpush2.msra.mxu0 0.0
    %270 = vmatprep.subr.mxu0 0.0
    %271 = vmatpush2.msra.mxu0 0.0
    %272 = vmatprep.subr.mxu0 0.0
    %273 = vmatpush2.msra.mxu0 0.0
    %274 = vmatprep.subr.mxu0 0.0
    %275 = vmatpush2.msra.mxu0 0.0
    %276 = vmatprep.subr.mxu0 0.0
    %277 = vmatpush2.msra.mxu0 0.0
    %278 = vmatprep.subr.mxu0 0.0
    %279 = vmatpush2.msra.mxu0 0.0
    %280 = vmatprep.subr.mxu0 0.0
    %281 = vmatpush2.msra.mxu0 0.0
    %282 = vmatprep.subr.mxu0 0.0
    %283 = vmatpush2.msra.mxu0 0.0
    %284 = vmatprep.subr.mxu0 0.0
    %285 = vmatpush2.msra.mxu0 0.0
    %286 = vmatprep.subr.mxu0 0.0
    %287 = vmatpush2.msra.mxu0 0.0
    %288 = vmatprep.subr.mxu0 0.0
    %289 = vmatpush2.msra.mxu0 0.0
    %290 = vmatprep.subr.mxu0 0.0
    %291 = vmatpush2.msra.mxu0 0.0
    %292 = vmatprep.subr.mxu0 0.0
    %293 = vmatpush2.msra.mxu0 0.0
    %294 = vmatprep.subr.mxu0 0.0
    %295 = vmatpush2.msra.mxu0 0.0
    %296 = vmatprep.subr.mxu0 0.0
    %297 = vmatpush2.msra.mxu0 0.0
    %298 = vmatprep.subr.mxu0 0.0
    %299 = vmatpush2.msra.mxu0 0.0
    %300 = vmatprep.mubr.f32.mxu0 0.0
    %301 = vmatmul.mubr.f32.gmra.mxu0 %v234
    %v302 = vpop.f32.mrf.mxu0
    %v303 = vadd.f32 0.0, %v302
    %v304 = vpop.f32.mrf.mxu0
    %305 = vdwg.mxu0
    %v306 = vmul.f32 %v227, %v227
    %307 = vmatprep.subr.mxu0 0.0
    %308 = vmatpush1.msra.mxu0 0.0
    %309 = vmatprep.subr.mxu0 0.0
    %310 = vmatpush1.msra.mxu0 0.0
    %311 = vmatprep.subr.mxu0 0.0
    %312 = vmatpush1.msra.mxu0 0.0
    %313 = vmatprep.subr.mxu0 0.0
    %314 = vmatpush1.msra.mxu0 0.0
    %315 = vmatprep.subr.mxu0 0.0
    %316 = vmatpush1.msra.mxu0 0.0
    %317 = vmatprep.subr.mxu0 0.0
    %318 = vmatpush1.msra.mxu0 0.0
    %319 = vmatprep.subr.mxu0 0.0
    %320 = vmatpush1.msra.mxu0 0.0
    %321 = vmatprep.subr.mxu0 0.0
    %322 = vmatpush1.msra.mxu0 0.0
    %323 = vmatprep.subr.mxu0 0.0
    %324 = vmatpush1.msra.mxu0 0.0
    %325 = vmatprep.subr.mxu0 0.0
    %326 = vmatpush1.msra.mxu0 0.0
    %327 = vmatprep.subr.mxu0 0.0
    %328 = vmatpush1.msra.mxu0 0.0
    %329 = vmatprep.subr.mxu0 0.0
    %330 = vmatpush1.msra.mxu0 0.0
    %331 = vmatprep.subr.mxu0 0.0
    %332 = vmatpush1.msra.mxu0 0.0
    %333 = vmatprep.subr.mxu0 0.0
    %334 = vmatpush1.msra.mxu0 0.0
    %335 = vmatprep.subr.mxu0 0.0
    %336 = vmatpush1.msra.mxu0 0.0
    %337 = vmatprep.subr.mxu0 0.0
    %338 = vmatpush1.msra.mxu0 %v306
    %339 = vmatprep.subr.mxu0 0.0
    %340 = vmatpush2.msra.mxu0 0.0
    %341 = vmatprep.subr.mxu0 0.0
    %342 = vmatpush2.msra.mxu0 0.0
    %343 = vmatprep.subr.mxu0 0.0
    %344 = vmatpush2.msra.mxu0 0.0
    %345 = vmatprep.subr.mxu0 0.0
    %346 = vmatpush2.msra.mxu0 0.0
    %347 = vmatprep.subr.mxu0 0.0
    %348 = vmatpush2.msra.mxu0 0.0
    %349 = vmatprep.subr.mxu0 0.0
    %350 = vmatpush2.msra.mxu0 0.0
    %351 = vmatprep.subr.mxu0 0.0
    %352 = vmatpush2.msra.mxu0 0.0
    %353 = vmatprep.subr.mxu0 0.0
    %354 = vmatpush2.msra.mxu0 0.0
    %355 = vmatprep.subr.mxu0 0.0
    %356 = vmatpush2.msra.mxu0 0.0
    %357 = vmatprep.subr.mxu0 0.0
    %358 = vmatpush2.msra.mxu0 0.0
    %359 = vmatprep.subr.mxu0 0.0
    %360 = vmatpush2.msra.mxu0 0.0
    %361 = vmatprep.subr.mxu0 0.0
    %362 = vmatpush2.msra.mxu0 0.0
    %363 = vmatprep.subr.mxu0 0.0
    %364 = vmatpush2.msra.mxu0 0.0
    %365 = vmatprep.subr.mxu0 0.0
    %366 = vmatpush2.msra.mxu0 0.0
    %367 = vmatprep.subr.mxu0 0.0
    %368 = vmatpush2.msra.mxu0 0.0
    %369 = vmatprep.subr.mxu0 0.0
    %370 = vmatpush2.msra.mxu0 0.0
    %371 = vmatprep.mubr.f32.mxu0 0.0
    %372 = vmatmul.mubr.f32.gmra.mxu0 %v234
    %v373 = vpop.f32.mrf.mxu0
    %v374 = vadd.f32 0.0, %v373
    %v375 = vpop.f32.mrf.mxu0
    %376 = vdwg.mxu0
    %v377 = vmul.f32 %v303, %v303
    %v378 = vsub.f32 %v374, %v377
    %v379 = vmax.f32 %v378, 0.0
    %v380 = vadd.f32 %v379, 1e-05
    %v381 = vrsqrt.pop %v380
    %v382 = vmul.f32 %v142, %v381
    %v383 = vmul.f32 %v303, %v382
    %v384 = vsub.f32 %v143, %v383
    %v386 = vlaneseq
    %v387 = vshrl.u32 %v386, 7
    %v388 = vsub.s32 0, %v387
    %v389 = vrot.slane %v382, %v388
    %v391 = vmul.f32 %v227, %v389
    %v393 = vlaneseq
    %v394 = vshrl.u32 %v393, 7
    %v395 = vsub.s32 0, %v394
    %v396 = vrot.slane %v384, %v395
    %v398 = vadd.f32 %v391, %v396
    %v399 = vmax.f32 %v398, 0.0
    %v400 = vpack.c.bf16 %v399, %v399
    %v401 = vld [vmem:[#allocation8] sm:$0xf]
    %v402 = vld [vmem:[#allocation8 + $0x4] sm:$0xf]
    %v403 = vld [vmem:[#allocation8 + $0x8] sm:$0xf]
    %v404 = vld [vmem:[#allocation8 + $0xc] sm:$0xf]
    %v405 = vld [vmem:[#allocation8 + $0x10] sm:$0xf]
    %v406 = vld [vmem:[#allocation8 + $0x14] sm:$0xf]
    %v407 = vld [vmem:[#allocation8 + $0x18] sm:$0xf]
    %v408 = vld [vmem:[#allocation8 + $0x1c] sm:$0xf]
    %v409 = vld [vmem:[#allocation8 + $0x20] sm:$0xf]
    %v410 = vld [vmem:[#allocation8 + $0x24] sm:$0xf]
    %v411 = vld [vmem:[#allocation8 + $0x28] sm:$0xf]
    %v412 = vld [vmem:[#allocation8 + $0x2c] sm:$0xf]
    %v413 = vld [vmem:[#allocation8 + $0x30] sm:$0xf]
    %v414 = vld [vmem:[#allocation8 + $0x34] sm:$0xf]
    %v415 = vld [vmem:[#allocation8 + $0x38] sm:$0xf]
    %v416 = vld [vmem:[#allocation8 + $0x3c] sm:$0xf]
    %v417 = vld [vmem:[%s6] sm:$0x1]
    %v418 = vld [vmem:[%s7] sm:$0x1]
    %v435 = vunpack.c.l.b16 %v401
    %v436 = vunpack.c.l.b16 %v402
    %v437 = vunpack.c.l.b16 %v403
    %v438 = vunpack.c.l.b16 %v404
    %v439 = vunpack.c.l.b16 %v405
    %v440 = vunpack.c.l.b16 %v406
    %v441 = vunpack.c.l.b16 %v407
    %v442 = vunpack.c.l.b16 %v408
    %v443 = vunpack.c.l.b16 %v409
    %v444 = vunpack.c.l.b16 %v410
    %v445 = vunpack.c.l.b16 %v411
    %v446 = vunpack.c.l.b16 %v412
    %v447 = vunpack.c.l.b16 %v413
    %v448 = vunpack.c.l.b16 %v414
    %v449 = vunpack.c.l.b16 %v415
    %v450 = vunpack.c.l.b16 %v416
    %v451 = vpack.c.b16 %v436, %v435
    %v452 = vpack.c.b16 %v438, %v437
    %v453 = vpack.c.b16 %v440, %v439
    %v454 = vpack.c.b16 %v442, %v441
    %v455 = vpack.c.b16 %v444, %v443
    %v456 = vpack.c.b16 %v446, %v445
    %v457 = vpack.c.b16 %v448, %v447
    %v458 = vpack.c.b16 %v450, %v449
    %467 = vmatprep.subr.bf16.mxu0 0
    %468 = vmatpush1.bf16.msra.mxu0 %v458
    %469 = vmatprep.subr.bf16.mxu0 0
    %470 = vmatpush1.bf16.msra.mxu0 %v457
    %471 = vmatprep.subr.bf16.mxu0 0
    %472 = vmatpush1.bf16.msra.mxu0 %v456
    %473 = vmatprep.subr.bf16.mxu0 0
    %474 = vmatpush1.bf16.msra.mxu0 %v455
    %475 = vmatprep.subr.bf16.mxu0 0
    %476 = vmatpush1.bf16.msra.mxu0 %v454
    %477 = vmatprep.subr.bf16.mxu0 0
    %478 = vmatpush1.bf16.msra.mxu0 %v453
    %479 = vmatprep.subr.bf16.mxu0 0
    %480 = vmatpush1.bf16.msra.mxu0 %v452
    %481 = vmatprep.subr.bf16.mxu0 0
    %482 = vmatpush1.bf16.msra.mxu0 %v451
    %483 = vmatprep.subr.bf16.mxu0 0
    %484 = vmatpush2.bf16.msra.mxu0 0
    %485 = vmatprep.subr.bf16.mxu0 0
    %486 = vmatpush2.bf16.msra.mxu0 0
    %487 = vmatprep.subr.bf16.mxu0 0
    %488 = vmatpush2.bf16.msra.mxu0 0
    %489 = vmatprep.subr.bf16.mxu0 0
    %490 = vmatpush2.bf16.msra.mxu0 0
    %491 = vmatprep.subr.bf16.mxu0 0
    %492 = vmatpush2.bf16.msra.mxu0 0
    %493 = vmatprep.subr.bf16.mxu0 0
    %494 = vmatpush2.bf16.msra.mxu0 0
    %495 = vmatprep.subr.bf16.mxu0 0
    %496 = vmatpush2.bf16.msra.mxu0 0
    %497 = vmatprep.subr.bf16.mxu0 0
    %498 = vmatpush2.bf16.msra.mxu0 0
    %499 = vmatprep.mubr.bf16.mxu0 0
    %500 = vmatmul.mubr.bf16.gmra.mxu0 %v400
    %v501 = vpop.f32.mrf.mxu0
    %v502 = vadd.f32 0.0, %v501
    %v503 = vpop.f32.mrf.mxu0
    %v504 = vpop.f32.mrf.mxu0
    %v505 = vpop.f32.mrf.mxu0
    %506 = vdwg.mxu0
    %507 = vmatprep.subr.mxu0 0.0
    %508 = vmatpush1.msra.mxu0 0.0
    %509 = vmatprep.subr.mxu0 0.0
    %510 = vmatpush1.msra.mxu0 0.0
    %511 = vmatprep.subr.mxu0 0.0
    %512 = vmatpush1.msra.mxu0 0.0
    %513 = vmatprep.subr.mxu0 0.0
    %514 = vmatpush1.msra.mxu0 0.0
    %515 = vmatprep.subr.mxu0 0.0
    %516 = vmatpush1.msra.mxu0 0.0
    %517 = vmatprep.subr.mxu0 0.0
    %518 = vmatpush1.msra.mxu0 0.0
    %519 = vmatprep.subr.mxu0 0.0
    %520 = vmatpush1.msra.mxu0 0.0
    %521 = vmatprep.subr.mxu0 0.0
    %522 = vmatpush1.msra.mxu0 0.0
    %523 = vmatprep.subr.mxu0 0.0
    %524 = vmatpush1.msra.mxu0 0.0
    %525 = vmatprep.subr.mxu0 0.0
    %526 = vmatpush1.msra.mxu0 0.0
    %527 = vmatprep.subr.mxu0 0.0
    %528 = vmatpush1.msra.mxu0 0.0
    %529 = vmatprep.subr.mxu0 0.0
    %530 = vmatpush1.msra.mxu0 0.0
    %531 = vmatprep.subr.mxu0 0.0
    %532 = vmatpush1.msra.mxu0 0.0
    %533 = vmatprep.subr.mxu0 0.0
    %534 = vmatpush1.msra.mxu0 0.0
    %535 = vmatprep.subr.mxu0 0.0
    %536 = vmatpush1.msra.mxu0 0.0
    %537 = vmatprep.subr.mxu0 0.0
    %538 = vmatpush1.msra.mxu0 %v502
    %539 = vmatprep.subr.mxu0 0.0
    %540 = vmatpush2.msra.mxu0 0.0
    %541 = vmatprep.subr.mxu0 0.0
    %542 = vmatpush2.msra.mxu0 0.0
    %543 = vmatprep.subr.mxu0 0.0
    %544 = vmatpush2.msra.mxu0 0.0
    %545 = vmatprep.subr.mxu0 0.0
    %546 = vmatpush2.msra.mxu0 0.0
    %547 = vmatprep.subr.mxu0 0.0
    %548 = vmatpush2.msra.mxu0 0.0
    %549 = vmatprep.subr.mxu0 0.0
    %550 = vmatpush2.msra.mxu0 0.0
    %551 = vmatprep.subr.mxu0 0.0
    %552 = vmatpush2.msra.mxu0 0.0
    %553 = vmatprep.subr.mxu0 0.0
    %554 = vmatpush2.msra.mxu0 0.0
    %555 = vmatprep.subr.mxu0 0.0
    %556 = vmatpush2.msra.mxu0 0.0
    %557 = vmatprep.subr.mxu0 0.0
    %558 = vmatpush2.msra.mxu0 0.0
    %559 = vmatprep.subr.mxu0 0.0
    %560 = vmatpush2.msra.mxu0 0.0
    %561 = vmatprep.subr.mxu0 0.0
    %562 = vmatpush2.msra.mxu0 0.0
    %563 = vmatprep.subr.mxu0 0.0
    %564 = vmatpush2.msra.mxu0 0.0
    %565 = vmatprep.subr.mxu0 0.0
    %566 = vmatpush2.msra.mxu0 0.0
    %567 = vmatprep.subr.mxu0 0.0
    %568 = vmatpush2.msra.mxu0 0.0
    %569 = vmatprep.subr.mxu0 0.0
    %570 = vmatpush2.msra.mxu0 0.0
    %571 = vmatprep.mubr.f32.mxu0 0.0
    %572 = vmatmul.mubr.f32.gmra.mxu0 %v234
    %v573 = vpop.f32.mrf.mxu0
    %v574 = vadd.f32 0.0, %v573
    %v575 = vpop.f32.mrf.mxu0
    %576 = vdwg.mxu0
    %v577 = vmul.f32 %v502, %v502
    %578 = vmatprep.subr.mxu0 0.0
    %579 = vmatpush1.msra.mxu0 0.0
    %580 = vmatprep.subr.mxu0 0.0
    %581 = vmatpush1.msra.mxu0 0.0
    %582 = vmatprep.subr.mxu0 0.0
    %583 = vmatpush1.msra.mxu0 0.0
    %584 = vmatprep.subr.mxu0 0.0
    %585 = vmatpush1.msra.mxu0 0.0
    %586 = vmatprep.subr.mxu0 0.0
    %587 = vmatpush1.msra.mxu0 0.0
    %588 = vmatprep.subr.mxu0 0.0
    %589 = vmatpush1.msra.mxu0 0.0
    %590 = vmatprep.subr.mxu0 0.0
    %591 = vmatpush1.msra.mxu0 0.0
    %592 = vmatprep.subr.mxu0 0.0
    %593 = vmatpush1.msra.mxu0 0.0
    %594 = vmatprep.subr.mxu0 0.0
    %595 = vmatpush1.msra.mxu0 0.0
    %596 = vmatprep.subr.mxu0 0.0
    %597 = vmatpush1.msra.mxu0 0.0
    %598 = vmatprep.subr.mxu0 0.0
    %599 = vmatpush1.msra.mxu0 0.0
    %600 = vmatprep.subr.mxu0 0.0
    %601 = vmatpush1.msra.mxu0 0.0
    %602 = vmatprep.subr.mxu0 0.0
    %603 = vmatpush1.msra.mxu0 0.0
    %604 = vmatprep.subr.mxu0 0.0
    %605 = vmatpush1.msra.mxu0 0.0
    %606 = vmatprep.subr.mxu0 0.0
    %607 = vmatpush1.msra.mxu0 0.0
    %608 = vmatprep.subr.mxu0 0.0
    %609 = vmatpush1.msra.mxu0 %v577
    %610 = vmatprep.subr.mxu0 0.0
    %611 = vmatpush2.msra.mxu0 0.0
    %612 = vmatprep.subr.mxu0 0.0
    %613 = vmatpush2.msra.mxu0 0.0
    %614 = vmatprep.subr.mxu0 0.0
    %615 = vmatpush2.msra.mxu0 0.0
    %616 = vmatprep.subr.mxu0 0.0
    %617 = vmatpush2.msra.mxu0 0.0
    %618 = vmatprep.subr.mxu0 0.0
    %619 = vmatpush2.msra.mxu0 0.0
    %620 = vmatprep.subr.mxu0 0.0
    %621 = vmatpush2.msra.mxu0 0.0
    %622 = vmatprep.subr.mxu0 0.0
    %623 = vmatpush2.msra.mxu0 0.0
    %624 = vmatprep.subr.mxu0 0.0
    %625 = vmatpush2.msra.mxu0 0.0
    %626 = vmatprep.subr.mxu0 0.0
    %627 = vmatpush2.msra.mxu0 0.0
    %628 = vmatprep.subr.mxu0 0.0
    %629 = vmatpush2.msra.mxu0 0.0
    %630 = vmatprep.subr.mxu0 0.0
    %631 = vmatpush2.msra.mxu0 0.0
    %632 = vmatprep.subr.mxu0 0.0
    %633 = vmatpush2.msra.mxu0 0.0
    %634 = vmatprep.subr.mxu0 0.0
    %635 = vmatpush2.msra.mxu0 0.0
    %636 = vmatprep.subr.mxu0 0.0
    %637 = vmatpush2.msra.mxu0 0.0
    %638 = vmatprep.subr.mxu0 0.0
    %639 = vmatpush2.msra.mxu0 0.0
    %640 = vmatprep.subr.mxu0 0.0
    %641 = vmatpush2.msra.mxu0 0.0
    %642 = vmatprep.mubr.f32.mxu0 0.0
    %643 = vmatmul.mubr.f32.gmra.mxu0 %v234
    %v644 = vpop.f32.mrf.mxu0
    %v645 = vadd.f32 0.0, %v644
    %v646 = vpop.f32.mrf.mxu0
    %647 = vdwg.mxu0
    %v648 = vmul.f32 %v574, %v574
    %v649 = vsub.f32 %v645, %v648
    %v650 = vmax.f32 %v649, 0.0
    %v651 = vadd.f32 %v650, 1e-05
    %v652 = vrsqrt.pop %v651
    %v653 = vmul.f32 %v417, %v652
    %v654 = vmul.f32 %v574, %v653
    %v655 = vsub.f32 %v418, %v654
    %v657 = vlaneseq
    %v658 = vshrl.u32 %v657, 7
    %v659 = vsub.s32 0, %v658
    %v660 = vrot.slane %v653, %v659
    %v662 = vmul.f32 %v502, %v660
    %v664 = vlaneseq
    %v665 = vshrl.u32 %v664, 7
    %v666 = vsub.s32 0, %v665
    %v667 = vrot.slane %v655, %v666
    %v669 = vadd.f32 %v662, %v667
    %v670 = vmax.f32 %v669, 0.0
    %v671 = vpack.c.bf16 %v670, %v670
    %v672 = vld [vmem:[#allocation10] sm:$0xf]
    %v673 = vld [vmem:[#allocation10 + $0x4] sm:$0xf]
    %v674 = vld [vmem:[#allocation10 + $0x8] sm:$0xf]
    %v675 = vld [vmem:[#allocation10 + $0xc] sm:$0xf]
    %v676 = vld [vmem:[#allocation10 + $0x10] sm:$0xf]
    %v677 = vld [vmem:[#allocation10 + $0x14] sm:$0xf]
    %v678 = vld [vmem:[#allocation10 + $0x18] sm:$0xf]
    %v679 = vld [vmem:[#allocation10 + $0x1c] sm:$0xf]
    %v680 = vld [vmem:[#allocation10 + $0x20] sm:$0xf]
    %v681 = vld [vmem:[#allocation10 + $0x24] sm:$0xf]
    %v682 = vld [vmem:[#allocation10 + $0x28] sm:$0xf]
    %v683 = vld [vmem:[#allocation10 + $0x2c] sm:$0xf]
    %v684 = vld [vmem:[#allocation10 + $0x30] sm:$0xf]
    %v685 = vld [vmem:[#allocation10 + $0x34] sm:$0xf]
    %v686 = vld [vmem:[#allocation10 + $0x38] sm:$0xf]
    %v687 = vld [vmem:[#allocation10 + $0x3c] sm:$0xf]
    %v688 = vld [vmem:[%s9] sm:$0x1]
    %v689 = vld [vmem:[%s10] sm:$0x1]
    %v706 = vunpack.c.l.b16 %v672
    %v707 = vunpack.c.l.b16 %v673
    %v708 = vunpack.c.l.b16 %v674
    %v709 = vunpack.c.l.b16 %v675
    %v710 = vunpack.c.l.b16 %v676
    %v711 = vunpack.c.l.b16 %v677
    %v712 = vunpack.c.l.b16 %v678
    %v713 = vunpack.c.l.b16 %v679
    %v714 = vunpack.c.l.b16 %v680
    %v715 = vunpack.c.l.b16 %v681
    %v716 = vunpack.c.l.b16 %v682
    %v717 = vunpack.c.l.b16 %v683
    %v718 = vunpack.c.l.b16 %v684
    %v719 = vunpack.c.l.b16 %v685
    %v720 = vunpack.c.l.b16 %v686
    %v721 = vunpack.c.l.b16 %v687
    %v722 = vpack.c.b16 %v707, %v706
    %v723 = vpack.c.b16 %v709, %v708
    %v724 = vpack.c.b16 %v711, %v710
    %v725 = vpack.c.b16 %v713, %v712
    %v726 = vpack.c.b16 %v715, %v714
    %v727 = vpack.c.b16 %v717, %v716
    %v728 = vpack.c.b16 %v719, %v718
    %v729 = vpack.c.b16 %v721, %v720
    %738 = vmatprep.subr.bf16.mxu0 0
    %739 = vmatpush1.bf16.msra.mxu0 %v729
    %740 = vmatprep.subr.bf16.mxu0 0
    %741 = vmatpush1.bf16.msra.mxu0 %v728
    %742 = vmatprep.subr.bf16.mxu0 0
    %743 = vmatpush1.bf16.msra.mxu0 %v727
    %744 = vmatprep.subr.bf16.mxu0 0
    %745 = vmatpush1.bf16.msra.mxu0 %v726
    %746 = vmatprep.subr.bf16.mxu0 0
    %747 = vmatpush1.bf16.msra.mxu0 %v725
    %748 = vmatprep.subr.bf16.mxu0 0
    %749 = vmatpush1.bf16.msra.mxu0 %v724
    %750 = vmatprep.subr.bf16.mxu0 0
    %751 = vmatpush1.bf16.msra.mxu0 %v723
    %752 = vmatprep.subr.bf16.mxu0 0
    %753 = vmatpush1.bf16.msra.mxu0 %v722
    %754 = vmatprep.subr.bf16.mxu0 0
    %755 = vmatpush2.bf16.msra.mxu0 0
    %756 = vmatprep.subr.bf16.mxu0 0
    %757 = vmatpush2.bf16.msra.mxu0 0
    %758 = vmatprep.subr.bf16.mxu0 0
    %759 = vmatpush2.bf16.msra.mxu0 0
    %760 = vmatprep.subr.bf16.mxu0 0
    %761 = vmatpush2.bf16.msra.mxu0 0
    %762 = vmatprep.subr.bf16.mxu0 0
    %763 = vmatpush2.bf16.msra.mxu0 0
    %764 = vmatprep.subr.bf16.mxu0 0
    %765 = vmatpush2.bf16.msra.mxu0 0
    %766 = vmatprep.subr.bf16.mxu0 0
    %767 = vmatpush2.bf16.msra.mxu0 0
    %768 = vmatprep.subr.bf16.mxu0 0
    %769 = vmatpush2.bf16.msra.mxu0 0
    %770 = vmatprep.mubr.bf16.mxu0 0
    %771 = vmatmul.mubr.bf16.gmra.mxu0 %v671
    %v772 = vpop.f32.mrf.mxu0
    %v773 = vadd.f32 0.0, %v772
    %v774 = vpop.f32.mrf.mxu0
    %v775 = vpop.f32.mrf.mxu0
    %v776 = vpop.f32.mrf.mxu0
    %777 = vdwg.mxu0
    %778 = vmatprep.subr.mxu0 0.0
    %779 = vmatpush1.msra.mxu0 0.0
    %780 = vmatprep.subr.mxu0 0.0
    %781 = vmatpush1.msra.mxu0 0.0
    %782 = vmatprep.subr.mxu0 0.0
    %783 = vmatpush1.msra.mxu0 0.0
    %784 = vmatprep.subr.mxu0 0.0
    %785 = vmatpush1.msra.mxu0 0.0
    %786 = vmatprep.subr.mxu0 0.0
    %787 = vmatpush1.msra.mxu0 0.0
    %788 = vmatprep.subr.mxu0 0.0
    %789 = vmatpush1.msra.mxu0 0.0
    %790 = vmatprep.subr.mxu0 0.0
    %791 = vmatpush1.msra.mxu0 0.0
    %792 = vmatprep.subr.mxu0 0.0
    %793 = vmatpush1.msra.mxu0 0.0
    %794 = vmatprep.subr.mxu0 0.0
    %795 = vmatpush1.msra.mxu0 0.0
    %796 = vmatprep.subr.mxu0 0.0
    %797 = vmatpush1.msra.mxu0 0.0
    %798 = vmatprep.subr.mxu0 0.0
    %799 = vmatpush1.msra.mxu0 0.0
    %800 = vmatprep.subr.mxu0 0.0
    %801 = vmatpush1.msra.mxu0 0.0
    %802 = vmatprep.subr.mxu0 0.0
    %803 = vmatpush1.msra.mxu0 0.0
    %804 = vmatprep.subr.mxu0 0.0
    %805 = vmatpush1.msra.mxu0 0.0
    %806 = vmatprep.subr.mxu0 0.0
    %807 = vmatpush1.msra.mxu0 0.0
    %808 = vmatprep.subr.mxu0 0.0
    %809 = vmatpush1.msra.mxu0 %v773
    %810 = vmatprep.subr.mxu0 0.0
    %811 = vmatpush2.msra.mxu0 0.0
    %812 = vmatprep.subr.mxu0 0.0
    %813 = vmatpush2.msra.mxu0 0.0
    %814 = vmatprep.subr.mxu0 0.0
    %815 = vmatpush2.msra.mxu0 0.0
    %816 = vmatprep.subr.mxu0 0.0
    %817 = vmatpush2.msra.mxu0 0.0
    %818 = vmatprep.subr.mxu0 0.0
    %819 = vmatpush2.msra.mxu0 0.0
    %820 = vmatprep.subr.mxu0 0.0
    %821 = vmatpush2.msra.mxu0 0.0
    %822 = vmatprep.subr.mxu0 0.0
    %823 = vmatpush2.msra.mxu0 0.0
    %824 = vmatprep.subr.mxu0 0.0
    %825 = vmatpush2.msra.mxu0 0.0
    %826 = vmatprep.subr.mxu0 0.0
    %827 = vmatpush2.msra.mxu0 0.0
    %828 = vmatprep.subr.mxu0 0.0
    %829 = vmatpush2.msra.mxu0 0.0
    %830 = vmatprep.subr.mxu0 0.0
    %831 = vmatpush2.msra.mxu0 0.0
    %832 = vmatprep.subr.mxu0 0.0
    %833 = vmatpush2.msra.mxu0 0.0
    %834 = vmatprep.subr.mxu0 0.0
    %835 = vmatpush2.msra.mxu0 0.0
    %836 = vmatprep.subr.mxu0 0.0
    %837 = vmatpush2.msra.mxu0 0.0
    %838 = vmatprep.subr.mxu0 0.0
    %839 = vmatpush2.msra.mxu0 0.0
    %840 = vmatprep.subr.mxu0 0.0
    %841 = vmatpush2.msra.mxu0 0.0
    %842 = vmatprep.mubr.f32.mxu0 0.0
    %843 = vmatmul.mubr.f32.gmra.mxu0 %v234
    %v844 = vpop.f32.mrf.mxu0
    %v845 = vadd.f32 0.0, %v844
    %v846 = vpop.f32.mrf.mxu0
    %847 = vdwg.mxu0
    %v848 = vmul.f32 %v773, %v773
    %849 = vmatprep.subr.mxu0 0.0
    %850 = vmatpush1.msra.mxu0 0.0
    %851 = vmatprep.subr.mxu0 0.0
    %852 = vmatpush1.msra.mxu0 0.0
    %853 = vmatprep.subr.mxu0 0.0
    %854 = vmatpush1.msra.mxu0 0.0
    %855 = vmatprep.subr.mxu0 0.0
    %856 = vmatpush1.msra.mxu0 0.0
    %857 = vmatprep.subr.mxu0 0.0
    %858 = vmatpush1.msra.mxu0 0.0
    %859 = vmatprep.subr.mxu0 0.0
    %860 = vmatpush1.msra.mxu0 0.0
    %861 = vmatprep.subr.mxu0 0.0
    %862 = vmatpush1.msra.mxu0 0.0
    %863 = vmatprep.subr.mxu0 0.0
    %864 = vmatpush1.msra.mxu0 0.0
    %865 = vmatprep.subr.mxu0 0.0
    %866 = vmatpush1.msra.mxu0 0.0
    %867 = vmatprep.subr.mxu0 0.0
    %868 = vmatpush1.msra.mxu0 0.0
    %869 = vmatprep.subr.mxu0 0.0
    %870 = vmatpush1.msra.mxu0 0.0
    %871 = vmatprep.subr.mxu0 0.0
    %872 = vmatpush1.msra.mxu0 0.0
    %873 = vmatprep.subr.mxu0 0.0
    %874 = vmatpush1.msra.mxu0 0.0
    %875 = vmatprep.subr.mxu0 0.0
    %876 = vmatpush1.msra.mxu0 0.0
    %877 = vmatprep.subr.mxu0 0.0
    %878 = vmatpush1.msra.mxu0 0.0
    %879 = vmatprep.subr.mxu0 0.0
    %880 = vmatpush1.msra.mxu0 %v848
    %881 = vmatprep.subr.mxu0 0.0
    %882 = vmatpush2.msra.mxu0 0.0
    %883 = vmatprep.subr.mxu0 0.0
    %884 = vmatpush2.msra.mxu0 0.0
    %885 = vmatprep.subr.mxu0 0.0
    %886 = vmatpush2.msra.mxu0 0.0
    %887 = vmatprep.subr.mxu0 0.0
    %888 = vmatpush2.msra.mxu0 0.0
    %889 = vmatprep.subr.mxu0 0.0
    %890 = vmatpush2.msra.mxu0 0.0
    %891 = vmatprep.subr.mxu0 0.0
    %892 = vmatpush2.msra.mxu0 0.0
    %893 = vmatprep.subr.mxu0 0.0
    %894 = vmatpush2.msra.mxu0 0.0
    %895 = vmatprep.subr.mxu0 0.0
    %896 = vmatpush2.msra.mxu0 0.0
    %897 = vmatprep.subr.mxu0 0.0
    %898 = vmatpush2.msra.mxu0 0.0
    %899 = vmatprep.subr.mxu0 0.0
    %900 = vmatpush2.msra.mxu0 0.0
    %901 = vmatprep.subr.mxu0 0.0
    %902 = vmatpush2.msra.mxu0 0.0
    %903 = vmatprep.subr.mxu0 0.0
    %904 = vmatpush2.msra.mxu0 0.0
    %905 = vmatprep.subr.mxu0 0.0
    %906 = vmatpush2.msra.mxu0 0.0
    %907 = vmatprep.subr.mxu0 0.0
    %908 = vmatpush2.msra.mxu0 0.0
    %909 = vmatprep.subr.mxu0 0.0
    %910 = vmatpush2.msra.mxu0 0.0
    %911 = vmatprep.subr.mxu0 0.0
    %912 = vmatpush2.msra.mxu0 0.0
    %913 = vmatprep.mubr.f32.mxu0 0.0
    %914 = vmatmul.mubr.f32.gmra.mxu0 %v234
    %v915 = vpop.f32.mrf.mxu0
    %v916 = vadd.f32 0.0, %v915
    %v917 = vpop.f32.mrf.mxu0
    %918 = vdwg.mxu0
    %v919 = vmul.f32 %v845, %v845
    %v920 = vsub.f32 %v916, %v919
    %v921 = vmax.f32 %v920, 0.0
    %v922 = vadd.f32 %v921, 1e-05
    %v923 = vrsqrt.pop %v922
    %v924 = vmul.f32 %v688, %v923
    %v925 = vmul.f32 %v845, %v924
    %v926 = vsub.f32 %v689, %v925
    %v928 = vlaneseq
    %v929 = vshrl.u32 %v928, 7
    %v930 = vsub.s32 0, %v929
    %v931 = vrot.slane %v924, %v930
    %v933 = vmul.f32 %v773, %v931
    %v935 = vlaneseq
    %v936 = vshrl.u32 %v935, 7
    %v937 = vsub.s32 0, %v936
    %v938 = vrot.slane %v926, %v937
    %v940 = vadd.f32 %v933, %v938
    %v941 = vmax.f32 %v940, 0.0
    %v942 = vpack.c.bf16 %v941, %v941
    %v943 = vld [vmem:[#allocation11] sm:$0xf]
    %v944 = vld [vmem:[#allocation11 + $0x4] sm:$0xf]
    %v945 = vld [vmem:[#allocation11 + $0x8] sm:$0xf]
    %v946 = vld [vmem:[#allocation11 + $0xc] sm:$0xf]
    %v947 = vld [vmem:[#allocation11 + $0x10] sm:$0xf]
    %v948 = vld [vmem:[#allocation11 + $0x14] sm:$0xf]
    %v949 = vld [vmem:[#allocation11 + $0x18] sm:$0xf]
    %v950 = vld [vmem:[#allocation11 + $0x1c] sm:$0xf]
    %v951 = vld [vmem:[#allocation11 + $0x20] sm:$0xf]
    %v952 = vld [vmem:[#allocation11 + $0x24] sm:$0xf]
    %v953 = vld [vmem:[#allocation11 + $0x28] sm:$0xf]
    %v954 = vld [vmem:[#allocation11 + $0x2c] sm:$0xf]
    %v955 = vld [vmem:[#allocation11 + $0x30] sm:$0xf]
    %v956 = vld [vmem:[#allocation11 + $0x34] sm:$0xf]
    %v957 = vld [vmem:[#allocation11 + $0x38] sm:$0xf]
    %v958 = vld [vmem:[#allocation11 + $0x3c] sm:$0xf]
    %v959 = vld [vmem:[%s12] sm:$0x1]
    %v961 = vlaneseq
    %v962 = vshrl.u32 %v961, 7
    %v963 = vsub.s32 0, %v962
    %v964 = vrot.slane %v959, %v963
    %v982 = vunpack.c.l.b16 %v943
    %v983 = vunpack.c.l.b16 %v944
    %v984 = vunpack.c.l.b16 %v945
    %v985 = vunpack.c.l.b16 %v946
    %v986 = vunpack.c.l.b16 %v947
    %v987 = vunpack.c.l.b16 %v948
    %v988 = vunpack.c.l.b16 %v949
    %v989 = vunpack.c.l.b16 %v950
    %v990 = vunpack.c.l.b16 %v951
    %v991 = vunpack.c.l.b16 %v952
    %v992 = vunpack.c.l.b16 %v953
    %v993 = vunpack.c.l.b16 %v954
    %v994 = vunpack.c.l.b16 %v955
    %v995 = vunpack.c.l.b16 %v956
    %v996 = vunpack.c.l.b16 %v957
    %v997 = vunpack.c.l.b16 %v958
    %v998 = vpack.c.b16 %v983, %v982
    %v999 = vpack.c.b16 %v985, %v984
    %v1000 = vpack.c.b16 %v987, %v986
    %v1001 = vpack.c.b16 %v989, %v988
    %v1002 = vpack.c.b16 %v991, %v990
    %v1003 = vpack.c.b16 %v993, %v992
    %v1004 = vpack.c.b16 %v995, %v994
    %v1005 = vpack.c.b16 %v997, %v996
    %1014 = vmatprep.subr.bf16.mxu0 0
    %1015 = vmatpush1.bf16.msra.mxu0 %v1005
    %1016 = vmatprep.subr.bf16.mxu0 0
    %1017 = vmatpush1.bf16.msra.mxu0 %v1004
    %1018 = vmatprep.subr.bf16.mxu0 0
    %1019 = vmatpush1.bf16.msra.mxu0 %v1003
    %1020 = vmatprep.subr.bf16.mxu0 0
    %1021 = vmatpush1.bf16.msra.mxu0 %v1002
    %1022 = vmatprep.subr.bf16.mxu0 0
    %1023 = vmatpush1.bf16.msra.mxu0 %v1001
    %1024 = vmatprep.subr.bf16.mxu0 0
    %1025 = vmatpush1.bf16.msra.mxu0 %v1000
    %1026 = vmatprep.subr.bf16.mxu0 0
    %1027 = vmatpush1.bf16.msra.mxu0 %v999
    %1028 = vmatprep.subr.bf16.mxu0 0
    %1029 = vmatpush1.bf16.msra.mxu0 %v998
    %1030 = vmatprep.subr.bf16.mxu0 0
    %1031 = vmatpush2.bf16.msra.mxu0 0
    %1032 = vmatprep.subr.bf16.mxu0 0
    %1033 = vmatpush2.bf16.msra.mxu0 0
    %1034 = vmatprep.subr.bf16.mxu0 0
    %1035 = vmatpush2.bf16.msra.mxu0 0
    %1036 = vmatprep.subr.bf16.mxu0 0
    %1037 = vmatpush2.bf16.msra.mxu0 0
    %1038 = vmatprep.subr.bf16.mxu0 0
    %1039 = vmatpush2.bf16.msra.mxu0 0
    %1040 = vmatprep.subr.bf16.mxu0 0
    %1041 = vmatpush2.bf16.msra.mxu0 0
    %1042 = vmatprep.subr.bf16.mxu0 0
    %1043 = vmatpush2.bf16.msra.mxu0 0
    %1044 = vmatprep.subr.bf16.mxu0 0
    %1045 = vmatpush2.bf16.msra.mxu0 0
    %1046 = vmatprep.mubr.bf16.mxu0 0
    %1047 = vmatmul.mubr.bf16.gmra.mxu0 %v942
    %v1048 = vpop.f32.mrf.mxu0
    %v1049 = vadd.f32 %v964, %v1048
    %v1050 = vpop.f32.mrf.mxu0
    %v1051 = vpop.f32.mrf.mxu0
    %v1052 = vpop.f32.mrf.mxu0
    %1053 = vdwg.mxu0
    %1054 = vst [vmem:[#allocation13] sm:$0xff] %v1049
    // Predicated region
    $region78: #{tpu_custom_call.1} parent=1 // pred_check
      _
    $region79: #{tpu_custom_call.1} parent=1 // pred_check_branch
      %1056 = sbr.rel (0) target = $region81
    $region80: #{tpu_custom_call.1} parent=1 // pred_region
      %s1058 = ssub.s32 128, 128
      %1059 = vsyncadd [#allocation4], %s1058
      %s1061 = sshll.u32 [#allocation13], 4
      %s1062 = int_to_ptr.vmem [resolvable:$true] %s1061
      %1064 = dma.vmem_to_hbm [thread:$0]  %s1062, 128, %s13, [#allocation4]
    $region81: #{tpu_custom_call.1} parent=1 // pred_fallthru
      _
    // Predicated region
    $region82: #{tpu_custom_call.1} parent=1 // pred_check
      _
    $region83: #{tpu_custom_call.1} parent=1 // pred_check_branch
      %1066 = sbr.rel (0) target = $region85
    $region84: #{tpu_custom_call.1} parent=1 // pred_region
      %1067 = dma.done [#allocation4], 128
    $region85: #{tpu_custom_call.1} parent=1 // pred_fallthru
      _
    %1068 = vsyncpa [#allocation3], 1
    %1069 = vsyncpa [#allocation6], 1
    %1070 = vsyncpa [#allocation9], 1
    %1071 = vsyncpa [#allocation12], 1
    %1072 = vsyncpa [#allocation4], 1

</llo_original>
